<compile_context>
chip_gen: v7x
topology: tpu7x:2x2x1
jax: 0.10.0
libtpu: 0.0.40
codegen_flags: <defaults>
</compile_context>

<pallas_src>
import jax
import jax.numpy as jnp
from jax.experimental import pallas as pl
from jax.experimental.pallas import tpu as pltpu

# ---- synthetic hparams (small, consistent with the module) -------------------
RES_ENC_N_TOKENS = 4          # -> discriminator input_dim = 2 * 4 = 8
RES_ENC_N_LAYERS = 3          # hparams.res_enc_n_layers
RES_ENC_DIS_DIM = 32          # hparams.res_enc_dis_dim (hidden n_dim)
N_SPEAKERS = 4                # hparams.n_speakers
N_SYMBOLS = 12                # hparams.n_symbols
D_IN = RES_ENC_N_TOKENS * 2
HID = RES_ENC_DIS_DIM
D_OUT = N_SPEAKERS + N_SYMBOLS
BATCH = 2
LEAKY_SLOPE = 0.2

# Packed-input lane layout (width = HID = 32 lanes):
#   lanes [0, D_OUT)            : gt  = [gt_sym_durs | gt_speakers]   (matches output layout)
#   lanes [D_OUT, D_OUT+D_IN)   : mulogvar (discriminator input)
#   lane  D_OUT+D_IN, row 0     : res_enc_dMSE_weight
#   remaining lanes             : zero padding
GT_OFF = 0
X_OFF = D_OUT
W_COL = D_OUT + D_IN
assert W_COL + 1 <= HID, "packed input layout must fit in HID lanes"

# Parameter slab layout: one fp32 (3*LAYER_STRIDE, HID) array; layer i at row i*LAYER_STRIDE:
#   rows 0..HID-1 = W (HID, HID)  zero-padded;  row HID = bias (zero-padded)
# INVARIANTS (the kernel's masked epilogue relies on these — do not reuse/donate the
# slab buffer without re-zeroing):
#   * layer 0: only rows [X_OFF, X_OFF+D_IN) are non-zero, so the gt / weight lanes of
#     the packed input never leak into the activations;
#   * layer 2 (last): columns >= D_OUT of W and b are exactly zero, so out[:, D_OUT:]
#     is exactly zero and the full-width MSE masks are sound.
# LAYER_STRIDE = 40 keeps every layer's slice start sublane-aligned (multiple of 8).
LAYER_STRIDE = 40


def resgan_kernel(xin_ref, p_ref, out_ref, loss_ref):
    """Fused discriminator (3 x 1x1-conv == matmul) + split/softmax/sum-MSE loss.

    xin_ref : (B, HID)              VMEM fp32  packed [gt | mulogvar | weight | 0]
    p_ref   : (3*LAYER_STRIDE, HID) VMEM fp32  packed W|b slab (see layout above)
    out_ref : (B, HID)              VMEM fp32  raw discriminator output, cols >= D_OUT zero
    loss_ref: (2,)                  SMEM fp32  [res_enc_dMSE, weighted loss]
    """
    xin = xin_ref[...]                      # (B, HID)
    P = p_ref[...]                          # whole slab, ~15 KiB

    col = jax.lax.broadcasted_iota(jnp.int32, (BATCH, HID), 1)
    row = jax.lax.broadcasted_iota(jnp.int32, (BATCH, HID), 0)

    # 3 x (B, HID) @ (HID, HID) + bias; LeakyReLU(0.2) between layers.
    # Layer 0 sees the full packed input; its zero weight rows outside the mulogvar
    # lanes make this exactly mulogvar @ W0 + b0.
    h = xin
    for layer in range(RES_ENC_N_LAYERS):
        r0 = layer * LAYER_STRIDE
        h = jnp.dot(h, P[r0:r0 + HID, :], preferred_element_type=jnp.float32) \
            + P[r0 + HID:r0 + HID + 1, :]
        if layer + 1 < RES_ENC_N_LAYERS:
            h = jnp.where(h >= 0.0, h, LEAKY_SLOPE * h)

    # Raw discriminator output: untouched HID-wide vreg (cols >= D_OUT are zero).
    out_ref[...] = h

    # split([n_symbols, n_speakers], dim=1) + softmax over speakers — mask-based,
    # no lane-offset slices.
    spk_mask = (col >= N_SYMBOLS) & (col < D_OUT)
    m = jnp.max(jnp.where(spk_mask, h, -jnp.inf), axis=1, keepdims=True)
    e = jnp.where(spk_mask, jnp.exp(h - m), 0.0)
    denom = jnp.sum(e, axis=1, keepdims=True)
    p_soft = e / denom                      # exact reciprocal (free at this size)

    # cols < N_SYMBOLS: raw sym-dur preds; speaker cols: softmax; cols >= D_OUT: 0.
    pred = jnp.where(spk_mask, p_soft, h)
    gt = jnp.where(col < D_OUT, xin, 0.0)   # gt occupies lanes [0, D_OUT)
    diff = pred - gt
    scale = jnp.where(col < N_SYMBOLS, jnp.float32(1e-4), jnp.float32(1.0))
    dmse = jnp.sum(diff * diff * scale) / jnp.float32(BATCH)

    # dmse_weight is stashed at (row 0, lane W_COL) of the packed input.
    w = jnp.sum(jnp.where((row == 0) & (col == W_COL), xin, 0.0))
    loss_ref[0] = dmse
    loss_ref[1] = dmse * w


def resgan_forward(packed_in, param_slab):
    """Returns (discriminator_out (B, D_OUT), res_enc_dMSE, weighted_loss)."""
    vmem = pl.BlockSpec(memory_space=pltpu.MemorySpace.VMEM)
    smem = pl.BlockSpec(memory_space=pltpu.MemorySpace.SMEM)
    matmul_flops = 2 * BATCH * HID * HID * RES_ENC_N_LAYERS
    epilogue_flops = 12 * BATCH * HID
    bytes_accessed = 4 * (packed_in.size + param_slab.size + BATCH * HID + 2)
    out_full, scalars = pl.pallas_call(
        resgan_kernel,
        out_shape=(
            jax.ShapeDtypeStruct((BATCH, HID), jnp.float32),
            jax.ShapeDtypeStruct((2,), jnp.float32),
        ),
        in_specs=[vmem, vmem],
        out_specs=(vmem, smem),
        cost_estimate=pl.CostEstimate(
            flops=matmul_flops + epilogue_flops,
            transcendentals=BATCH * HID,          # exp computed full-width
            bytes_accessed=bytes_accessed,
        ),
    )(packed_in, param_slab)
    # TODO(synk): optimizer.zero_grad()/loss.backward()/optimizer.step() (and fp16 amp
    # loss scaling / .item() host sync) are training-loop side effects with no
    # forward-pass Pallas equivalent.
    return out_full[:, :D_OUT], scalars[0], scalars[1]


def init_params(key):
    """Deterministic init of the 3 Conv1d(kernel=1) layers, stored as (in, out) / (out,)."""
    dims = [(D_IN, HID), (HID, HID), (HID, D_OUT)]
    params = []
    for din, dout in dims:
        kw, kb, key = jax.random.split(key, 3)
        scale = 1.0 / jnp.sqrt(jnp.float32(din))            # matches Conv1d default bound
        w = jax.random.uniform(kw, (din, dout), jnp.float32, -scale, scale)
        b = jax.random.uniform(kb, (dout,), jnp.float32, -scale, scale)
        params.append((w, b))
    return params, key


def pack_params(params):
    """Pack [(W,b)] into one fp32 (3*LAYER_STRIDE, HID) slab.

    Invariants (relied on by the kernel's masked epilogue — see comment above):
      * layer 0's W occupies rows [X_OFF, X_OFF+D_IN); all other weight rows are zero.
      * last layer's W/b columns >= D_OUT are zero.
      * every layer's bias sits at row `layer*LAYER_STRIDE + HID`.
    """
    slab = jnp.zeros((RES_ENC_N_LAYERS * LAYER_STRIDE, HID), jnp.float32)
    for i, (w, b) in enumerate(params):
        din, dout = w.shape
        r0 = i * LAYER_STRIDE
        w_row0 = r0 + (X_OFF if i == 0 else 0)               # layer-0 rows follow X lanes
        slab = slab.at[w_row0:w_row0 + din, :dout].set(w)
        slab = slab.at[r0 + HID, :dout].set(b)
    return slab


def pack_inputs(mulogvar, gt_sym_durs, gt_speakers, dmse_weight):
    """Pack mulogvar + ground truth + loss weight into one (B, HID) fp32 array."""
    packed = jnp.zeros((BATCH, HID), jnp.float32)
    packed = packed.at[:, GT_OFF:GT_OFF + N_SYMBOLS].set(gt_sym_durs)
    packed = packed.at[:, GT_OFF + N_SYMBOLS:GT_OFF + D_OUT].set(gt_speakers)
    packed = packed.at[:, X_OFF:X_OFF + D_IN].set(mulogvar)
    packed = packed.at[0, W_COL].set(dmse_weight)
    return packed


if __name__ == "__main__":
    key = jax.random.PRNGKey(0)
    params, key = init_params(key)
    param_slab = pack_params(params)

    k_x, k_sym, k_spk = jax.random.split(key, 3)
    # mulogvar: (B, res_enc_n_tokens * 2) — the detached residual-encoder stats.
    mulogvar = jax.random.normal(k_x, (BATCH, D_IN), jnp.float32)
    gt_sym_durs = jax.random.normal(k_sym, (BATCH, N_SYMBOLS), jnp.float32)
    # gt_speakers is compared against a softmax output -> make it a distribution.
    gt_speakers = jax.nn.softmax(
        jax.random.normal(k_spk, (BATCH, N_SPEAKERS), jnp.float32), axis=1)
    dmse_weight = 0.5                                  # loss_scalars['res_enc_dMSE_weight']

    packed_in = pack_inputs(mulogvar, gt_sym_durs, gt_speakers, dmse_weight)
    out, res_enc_dMSE, loss = resgan_forward(packed_in, param_slab)
    jax.block_until_ready((out, res_enc_dMSE, loss))

    # reference check in plain JAX
    def ref_forward(x):
        h = x
        for i, (w, b) in enumerate(params):
            h = h @ w + b
            if i + 1 < len(params):
                h = jnp.where(h >= 0, h, LEAKY_SLOPE * h)
        sym, spk = h[:, :N_SYMBOLS], h[:, N_SYMBOLS:]
        p = jax.nn.softmax(spk, axis=1)
        dmse = (jnp.sum((sym - gt_sym_durs) ** 2) * 1e-4
                + jnp.sum((p - gt_speakers) ** 2)) / x.shape[0]
        return h, dmse

    ref_out, ref_dmse = ref_forward(mulogvar)
    assert jnp.allclose(out, ref_out, atol=1e-5), "discriminator output mismatch"
    assert jnp.allclose(res_enc_dMSE, ref_dmse, atol=1e-5, rtol=1e-5), "dMSE mismatch"
    assert jnp.allclose(loss, ref_dmse * dmse_weight, atol=1e-5, rtol=1e-5), \
        "weighted loss mismatch"

    print("KERNEL_OK")
</pallas_src>

<mosaic_0001>
module attributes {stable_mosaic.version = 11 : i64} {
  func.func @resgan_kernel(%arg0: memref<2x32xf32, #tpu.memory_space<vmem>>, %arg1: memref<120x32xf32, #tpu.memory_space<vmem>>, %arg2: memref<2x32xf32, #tpu.memory_space<vmem>>, %arg3: memref<2xf32, #tpu.memory_space<smem>>) attributes {dimension_semantics = [], scalar_prefetch = 0 : i64, scratch_operands = 0 : i64, tpu.core_type = #tpu.core_type<tc>} {
    %c0 = arith.constant 0 : index
    %c0_0 = arith.constant 0 : index
    %0 = vector.load %arg0[%c0, %c0_0] : memref<2x32xf32, #tpu.memory_space<vmem>>, vector<2x32xf32>
    %c0_1 = arith.constant 0 : index
    %c0_2 = arith.constant 0 : index
    %1 = vector.load %arg1[%c0_1, %c0_2] : memref<120x32xf32, #tpu.memory_space<vmem>>, vector<120x32xf32>
    %2 = tpu.iota {dimensions = array<i32: 1>} : vector<2x32xi32>
    %3 = tpu.iota {dimensions = array<i32: 0>} : vector<2x32xi32>
    %4 = vector.extract_strided_slice %1 {offsets = [0, 0], sizes = [32, 32], strides = [1, 1]} : vector<120x32xf32> to vector<32x32xf32>
    %cst = arith.constant dense<0.000000e+00> : vector<2x32xf32>
    %5 = tpu.matmul %0, %4, %cst {dimension_numbers = #tpu.dot_dimension_numbers<[1], [0], [0], [1], [0, 0, 1, 1], [], []>} : vector<2x32xf32>, vector<32x32xf32>, vector<2x32xf32> -> vector<2x32xf32>
    %6 = vector.extract_strided_slice %1 {offsets = [32, 0], sizes = [1, 32], strides = [1, 1]} : vector<120x32xf32> to vector<1x32xf32>
    %7 = vector.broadcast %6 : vector<1x32xf32> to vector<2x32xf32>
    %8 = arith.addf %5, %7 : vector<2x32xf32>
    %cst_3 = arith.constant 0.000000e+00 : f32
    %9 = vector.broadcast %cst_3 : f32 to vector<2x32xf32>
    %10 = arith.cmpf oge, %8, %9 : vector<2x32xf32>
    %cst_4 = arith.constant 2.000000e-01 : f32
    %11 = vector.broadcast %cst_4 : f32 to vector<2x32xf32>
    %12 = arith.mulf %11, %8 : vector<2x32xf32>
    %13 = arith.select %10, %8, %12 : vector<2x32xi1>, vector<2x32xf32>
    %14 = vector.extract_strided_slice %1 {offsets = [40, 0], sizes = [32, 32], strides = [1, 1]} : vector<120x32xf32> to vector<32x32xf32>
    %cst_5 = arith.constant dense<0.000000e+00> : vector<2x32xf32>
    %15 = tpu.matmul %13, %14, %cst_5 {dimension_numbers = #tpu.dot_dimension_numbers<[1], [0], [0], [1], [0, 0, 1, 1], [], []>} : vector<2x32xf32>, vector<32x32xf32>, vector<2x32xf32> -> vector<2x32xf32>
    %16 = vector.extract_strided_slice %1 {offsets = [72, 0], sizes = [1, 32], strides = [1, 1]} : vector<120x32xf32> to vector<1x32xf32>
    %17 = vector.broadcast %16 : vector<1x32xf32> to vector<2x32xf32>
    %18 = arith.addf %15, %17 : vector<2x32xf32>
    %cst_6 = arith.constant 0.000000e+00 : f32
    %19 = vector.broadcast %cst_6 : f32 to vector<2x32xf32>
    %20 = arith.cmpf oge, %18, %19 : vector<2x32xf32>
    %cst_7 = arith.constant 2.000000e-01 : f32
    %21 = vector.broadcast %cst_7 : f32 to vector<2x32xf32>
    %22 = arith.mulf %21, %18 : vector<2x32xf32>
    %23 = arith.select %20, %18, %22 : vector<2x32xi1>, vector<2x32xf32>
    %24 = vector.extract_strided_slice %1 {offsets = [80, 0], sizes = [32, 32], strides = [1, 1]} : vector<120x32xf32> to vector<32x32xf32>
    %cst_8 = arith.constant dense<0.000000e+00> : vector<2x32xf32>
    %25 = tpu.matmul %23, %24, %cst_8 {dimension_numbers = #tpu.dot_dimension_numbers<[1], [0], [0], [1], [0, 0, 1, 1], [], []>} : vector<2x32xf32>, vector<32x32xf32>, vector<2x32xf32> -> vector<2x32xf32>
    %26 = vector.extract_strided_slice %1 {offsets = [112, 0], sizes = [1, 32], strides = [1, 1]} : vector<120x32xf32> to vector<1x32xf32>
    %27 = vector.broadcast %26 : vector<1x32xf32> to vector<2x32xf32>
    %28 = arith.addf %25, %27 : vector<2x32xf32>
    %c0_9 = arith.constant 0 : index
    %c0_10 = arith.constant 0 : index
    %29 = vector.load %arg2[%c0_9, %c0_10] : memref<2x32xf32, #tpu.memory_space<vmem>>, vector<2x32xf32>
    tpu.vector_store %arg2[%c0_9, %c0_10], %28 {strides = array<i32>} : memref<2x32xf32, #tpu.memory_space<vmem>>, vector<2x32xf32>,
    %c12_i32 = arith.constant 12 : i32
    %30 = vector.broadcast %c12_i32 : i32 to vector<2x32xi32>
    %31 = arith.cmpi sge, %2, %30 : vector<2x32xi32>
    %c16_i32 = arith.constant 16 : i32
    %32 = vector.broadcast %c16_i32 : i32 to vector<2x32xi32>
    %33 = arith.cmpi slt, %2, %32 : vector<2x32xi32>
    %34 = arith.andi %31, %33 : vector<2x32xi1>
    %cst_11 = arith.constant 0xFF800000 : f32
    %35 = vector.broadcast %cst_11 : f32 to vector<2x32xf32>
    %36 = arith.select %34, %28, %35 : vector<2x32xi1>, vector<2x32xf32>
    %cst_12 = arith.constant dense<0xFF800000> : vector<2xf32>
    %37 = vector.multi_reduction <maximumf>, %36, %cst_12 [1] : vector<2x32xf32> to vector<2xf32>
    %38 = vector.shape_cast %37 : vector<2xf32> to vector<2x1xf32>
    %39 = vector.broadcast %38 : vector<2x1xf32> to vector<2x32xf32>
    %40 = arith.subf %28, %39 : vector<2x32xf32>
    %41 = math.exp %40 : vector<2x32xf32>
    %cst_13 = arith.constant 0.000000e+00 : f32
    %42 = vector.broadcast %cst_13 : f32 to vector<2x32xf32>
    %43 = arith.select %34, %41, %42 : vector<2x32xi1>, vector<2x32xf32>
    %cst_14 = arith.constant dense<0.000000e+00> : vector<2xf32>
    %44 = vector.multi_reduction <add>, %43, %cst_14 [1] : vector<2x32xf32> to vector<2xf32>
    %45 = vector.shape_cast %44 : vector<2xf32> to vector<2x1xf32>
    %46 = vector.broadcast %45 : vector<2x1xf32> to vector<2x32xf32>
    %47 = arith.divf %43, %46 : vector<2x32xf32>
    %48 = arith.select %34, %47, %28 : vector<2x32xi1>, vector<2x32xf32>
    %c16_i32_15 = arith.constant 16 : i32
    %49 = vector.broadcast %c16_i32_15 : i32 to vector<2x32xi32>
    %50 = arith.cmpi slt, %2, %49 : vector<2x32xi32>
    %cst_16 = arith.constant 0.000000e+00 : f32
    %51 = vector.broadcast %cst_16 : f32 to vector<2x32xf32>
    %52 = arith.select %50, %0, %51 : vector<2x32xi1>, vector<2x32xf32>
    %53 = arith.subf %48, %52 : vector<2x32xf32>
    %c12_i32_17 = arith.constant 12 : i32
    %54 = vector.broadcast %c12_i32_17 : i32 to vector<2x32xi32>
    %55 = arith.cmpi slt, %2, %54 : vector<2x32xi32>
    %cst_18 = arith.constant 9.99999974E-5 : f32
    %cst_19 = arith.constant 1.000000e+00 : f32
    %56 = vector.broadcast %cst_18 : f32 to vector<2x32xf32>
    %57 = vector.broadcast %cst_19 : f32 to vector<2x32xf32>
    %58 = arith.select %55, %56, %57 : vector<2x32xi1>, vector<2x32xf32>
    %59 = arith.mulf %53, %53 : vector<2x32xf32>
    %60 = arith.mulf %59, %58 : vector<2x32xf32>
    %61 = vector.shape_cast %60 : vector<2x32xf32> to vector<1x2x32xf32>
    %cst_20 = arith.constant dense<0.000000e+00> : vector<1xf32>
    %62 = vector.multi_reduction <add>, %61, %cst_20 [1, 2] : vector<1x2x32xf32> to vector<1xf32>
    %63 = vector.shape_cast %62 : vector<1xf32> to vector<1x1x1xf32>
    %64 = vector.extract %63[0, 0, 0] : f32 from vector<1x1x1xf32>
    %cst_21 = arith.constant 2.000000e+00 : f32
    %65 = arith.divf %64, %cst_21 : f32
    %c0_i32 = arith.constant 0 : i32
    %66 = vector.broadcast %c0_i32 : i32 to vector<2x32xi32>
    %67 = arith.cmpi eq, %3, %66 : vector<2x32xi32>
    %c24_i32 = arith.constant 24 : i32
    %68 = vector.broadcast %c24_i32 : i32 to vector<2x32xi32>
    %69 = arith.cmpi eq, %2, %68 : vector<2x32xi32>
    %70 = arith.andi %67, %69 : vector<2x32xi1>
    %cst_22 = arith.constant 0.000000e+00 : f32
    %71 = vector.broadcast %cst_22 : f32 to vector<2x32xf32>
    %72 = arith.select %70, %0, %71 : vector<2x32xi1>, vector<2x32xf32>
    %73 = vector.shape_cast %72 : vector<2x32xf32> to vector<1x2x32xf32>
    %cst_23 = arith.constant dense<0.000000e+00> : vector<1xf32>
    %74 = vector.multi_reduction <add>, %73, %cst_23 [1, 2] : vector<1x2x32xf32> to vector<1xf32>
    %75 = vector.shape_cast %74 : vector<1xf32> to vector<1x1x1xf32>
    %76 = vector.extract %75[0, 0, 0] : f32 from vector<1x1x1xf32>
    %c0_24 = arith.constant 0 : index
    %77 = memref.load %arg3[%c0_24] : memref<2xf32, #tpu.memory_space<smem>>
    memref.store %65, %arg3[%c0_24] : memref<2xf32, #tpu.memory_space<smem>>
    %78 = arith.mulf %65, %76 : f32
    %c1 = arith.constant 1 : index
    %79 = memref.load %arg3[%c1] : memref<2xf32, #tpu.memory_space<smem>>
    memref.store %78, %arg3[%c1] : memref<2xf32, #tpu.memory_space<smem>>
    return
  }
}

</mosaic_0001>

<llo_original>
// kernel: tpu_custom_call.1
$region0: #{tpu_custom_call.1}
  #allocation0 [shape = 'u32[]', space=smem, size = 0x4, offset = 0x4, fixed_abs, tag = 'smem constant byte address 0x4 - core index']
  #allocation1 [shape = 'u32[144,128]{1,0:T(1,128)}', space=vmem, size = 0x12000, scoped, tag = 'internal scratch']
  %s0 = inlined_call_operand.vmem [shape: f32[2,32], index: 0, kind: input, shape index: {}]
  %s1 = inlined_call_operand.vmem [shape: f32[120,32], index: 1, kind: input, shape index: {}]
  %s2 = inlined_call_operand.hbm [shape: f32[2,32], index: 2, kind: output, shape index: {0}]
  %s3 = inlined_call_operand.hbm [shape: f32[2], index: 3, kind: output, shape index: {1}]
  %4 = xla_tuple %s2, %s3
  %s5 = sld [smem:[#allocation0]]
  $region26: #{tpu_custom_call.1} parent=0
    _
  %s7 = ssub.s32 1, %s5
  %s8 = scalar_select 0, %s7, %s5
  $region1: #{tpu_custom_call.1} parent=0
    #allocation2 [shape = 'u8[1024]{0}', space=vmem, size = 0x400, scoped, tag = 'output window, operand 0, single buffered']
    #allocation3 [shape = 's32[1]{0}', space=sflag, size = 0x4, scoped, tag = 'scoped memory for tpu_custom_call.1']
    #allocation4 [shape = 's32[1]{0}', space=sflag, size = 0x4, scoped, tag = 'scoped memory for tpu_custom_call.1']
    #allocation5 [shape = 'u8[512]{0}', space=smem, size = 0x200, scoped, tag = 'output window, operand 1, single buffered']
    %9 = vsyncpa [#allocation3], 0
    %10 = vsyncpa [#allocation4], 0
    // Predicated region
    $region2: #{tpu_custom_call.1} parent=1 // pred_check
      _
    $region3: #{tpu_custom_call.1} parent=1 // pred_check_branch
      %12 = sbr.rel (0) target = $region5
    $region4: #{tpu_custom_call.1} parent=1 // pred_region
      _
    $region5: #{tpu_custom_call.1} parent=1 // pred_fallthru
      _
    // Predicated region
    $region6: #{tpu_custom_call.1} parent=1 // pred_check
      _
    $region7: #{tpu_custom_call.1} parent=1 // pred_check_branch
      %14 = sbr.rel (0) target = $region9
    $region8: #{tpu_custom_call.1} parent=1 // pred_region
      _
    $region9: #{tpu_custom_call.1} parent=1 // pred_fallthru
      _
    %v15 = vld [vmem:[%s0] sm:$0x3]
    %v16 = vld [vmem:[%s1] sm:$0xff]
    %v17 = vld [vmem:[%s1 + $0x8] sm:$0xff]
    %v18 = vld [vmem:[%s1 + $0x10] sm:$0xff]
    %v19 = vld [vmem:[%s1 + $0x18] sm:$0xff]
    %v20 = vld [vmem:[%s1 + $0x20] sm:$0xff]
    %v21 = vld [vmem:[%s1 + $0x28] sm:$0xff]
    %v22 = vld [vmem:[%s1 + $0x30] sm:$0xff]
    %v23 = vld [vmem:[%s1 + $0x38] sm:$0xff]
    %v24 = vld [vmem:[%s1 + $0x40] sm:$0xff]
    %v25 = vld [vmem:[%s1 + $0x48] sm:$0xff]
    %v26 = vld [vmem:[%s1 + $0x50] sm:$0xff]
    %v27 = vld [vmem:[%s1 + $0x58] sm:$0xff]
    %v28 = vld [vmem:[%s1 + $0x60] sm:$0xff]
    %v29 = vld [vmem:[%s1 + $0x68] sm:$0xff]
    %v30 = vld [vmem:[%s1 + $0x70] sm:$0xff]
    %v31 = vlaneseq
    %v32 = vand.u32 %v31, 127
    %v33 = vlaneseq
    %v34 = vshrl.u32 %v33, 7
    %v35 = vlaneseq
    %v36 = vshrl.u32 %v35, 7
    %v37 = vsub.s32 0, %v36
    %v38 = vrot.slane %v20, %v37
    %vm39 = vcmask 261120
    %v41 = vsel %vm39, %v15, 0
    %43 = vmatprep.subr.mxu0 0.0
    %44 = vmatpush1.msra.mxu0 %v16
    %45 = vmatprep.subr.mxu0 0.0
    %46 = vmatpush1.msra.mxu0 %v17
    %47 = vmatprep.subr.mxu0 0.0
    %48 = vmatpush1.msra.mxu0 %v18
    %49 = vmatprep.subr.mxu0 0.0
    %50 = vmatpush1.msra.mxu0 %v19
    %51 = vmatprep.subr.mxu0 0.0
    %52 = vmatpush1.msra.mxu0 0.0
    %53 = vmatprep.subr.mxu0 0.0
    %54 = vmatpush1.msra.mxu0 0.0
    %55 = vmatprep.subr.mxu0 0.0
    %56 = vmatpush1.msra.mxu0 0.0
    %57 = vmatprep.subr.mxu0 0.0
    %58 = vmatpush1.msra.mxu0 0.0
    %59 = vmatprep.subr.mxu0 0.0
    %60 = vmatpush1.msra.mxu0 0.0
    %61 = vmatprep.subr.mxu0 0.0
    %62 = vmatpush1.msra.mxu0 0.0
    %63 = vmatprep.subr.mxu0 0.0
    %64 = vmatpush1.msra.mxu0 0.0
    %65 = vmatprep.subr.mxu0 0.0
    %66 = vmatpush1.msra.mxu0 0.0
    %67 = vmatprep.subr.mxu0 0.0
    %68 = vmatpush1.msra.mxu0 0.0
    %69 = vmatprep.subr.mxu0 0.0
    %70 = vmatpush1.msra.mxu0 0.0
    %71 = vmatprep.subr.mxu0 0.0
    %72 = vmatpush1.msra.mxu0 0.0
    %73 = vmatprep.subr.mxu0 0.0
    %74 = vmatpush1.msra.mxu0 0.0
    %75 = vmatprep.subr.mxu0 0.0
    %76 = vmatpush1.msra.mxu0 0.0
    %77 = vmatprep.subr.mxu0 0.0
    %78 = vmatpush1.msra.mxu0 0.0
    %79 = vmatprep.subr.mxu0 0.0
    %80 = vmatpush1.msra.mxu0 0.0
    %81 = vmatprep.subr.mxu0 0.0
    %82 = vmatpush1.msra.mxu0 0.0
    %83 = vmatprep.subr.mxu0 0.0
    %84 = vmatpush1.msra.mxu0 0.0
    %85 = vmatprep.subr.mxu0 0.0
    %86 = vmatpush1.msra.mxu0 0.0
    %87 = vmatprep.subr.mxu0 0.0
    %88 = vmatpush1.msra.mxu0 0.0
    %89 = vmatprep.subr.mxu0 0.0
    %90 = vmatpush1.msra.mxu0 0.0
    %91 = vmatprep.subr.mxu0 0.0
    %92 = vmatpush1.msra.mxu0 0.0
    %93 = vmatprep.subr.mxu0 0.0
    %94 = vmatpush1.msra.mxu0 0.0
    %95 = vmatprep.subr.mxu0 0.0
    %96 = vmatpush1.msra.mxu0 0.0
    %97 = vmatprep.subr.mxu0 0.0
    %98 = vmatpush1.msra.mxu0 0.0
    %99 = vmatprep.subr.mxu0 0.0
    %100 = vmatpush1.msra.mxu0 0.0
    %101 = vmatprep.subr.mxu0 0.0
    %102 = vmatpush1.msra.mxu0 0.0
    %103 = vmatprep.subr.mxu0 0.0
    %104 = vmatpush1.msra.mxu0 0.0
    %105 = vmatprep.subr.mxu0 0.0
    %106 = vmatpush1.msra.mxu0 0.0
    %107 = vmatprep.mubr.f32.mxu0 0.0
    %108 = vmatmul.mubr.f32.gmra.mrb[0].mxu0 %v41
    %v109 = vpop.f32.mrb[0].mxu0
    %v110 = vadd.f32 %v38, %v109
    %v111 = vpop.f32.mrb[0].mxu0
    %112 = vdwg.mxu0
    %vm113 = vcmp.ge.f32.partialorder %v110, 0.0
    %v114 = vmul.f32 %v110, 0.2
    %v115 = vsel %vm113, %v110, %v114
    %v116 = vlaneseq
    %v117 = vshrl.u32 %v116, 7
    %v118 = vsub.s32 0, %v117
    %v119 = vrot.slane %v25, %v118
    %v121 = vsel %vm39, %v115, 0
    %123 = vmatprep.subr.mxu0 0.0
    %124 = vmatpush1.msra.mxu0 %v21
    %125 = vmatprep.subr.mxu0 0.0
    %126 = vmatpush1.msra.mxu0 %v22
    %127 = vmatprep.subr.mxu0 0.0
    %128 = vmatpush1.msra.mxu0 %v23
    %129 = vmatprep.subr.mxu0 0.0
    %130 = vmatpush1.msra.mxu0 %v24
    %131 = vmatprep.subr.mxu0 0.0
    %132 = vmatpush1.msra.mxu0 0.0
    %133 = vmatprep.subr.mxu0 0.0
    %134 = vmatpush1.msra.mxu0 0.0
    %135 = vmatprep.subr.mxu0 0.0
    %136 = vmatpush1.msra.mxu0 0.0
    %137 = vmatprep.subr.mxu0 0.0
    %138 = vmatpush1.msra.mxu0 0.0
    %139 = vmatprep.subr.mxu0 0.0
    %140 = vmatpush1.msra.mxu0 0.0
    %141 = vmatprep.subr.mxu0 0.0
    %142 = vmatpush1.msra.mxu0 0.0
    %143 = vmatprep.subr.mxu0 0.0
    %144 = vmatpush1.msra.mxu0 0.0
    %145 = vmatprep.subr.mxu0 0.0
    %146 = vmatpush1.msra.mxu0 0.0
    %147 = vmatprep.subr.mxu0 0.0
    %148 = vmatpush1.msra.mxu0 0.0
    %149 = vmatprep.subr.mxu0 0.0
    %150 = vmatpush1.msra.mxu0 0.0
    %151 = vmatprep.subr.mxu0 0.0
    %152 = vmatpush1.msra.mxu0 0.0
    %153 = vmatprep.subr.mxu0 0.0
    %154 = vmatpush1.msra.mxu0 0.0
    %155 = vmatprep.subr.mxu0 0.0
    %156 = vmatpush1.msra.mxu0 0.0
    %157 = vmatprep.subr.mxu0 0.0
    %158 = vmatpush1.msra.mxu0 0.0
    %159 = vmatprep.subr.mxu0 0.0
    %160 = vmatpush1.msra.mxu0 0.0
    %161 = vmatprep.subr.mxu0 0.0
    %162 = vmatpush1.msra.mxu0 0.0
    %163 = vmatprep.subr.mxu0 0.0
    %164 = vmatpush1.msra.mxu0 0.0
    %165 = vmatprep.subr.mxu0 0.0
    %166 = vmatpush1.msra.mxu0 0.0
    %167 = vmatprep.subr.mxu0 0.0
    %168 = vmatpush1.msra.mxu0 0.0
    %169 = vmatprep.subr.mxu0 0.0
    %170 = vmatpush1.msra.mxu0 0.0
    %171 = vmatprep.subr.mxu0 0.0
    %172 = vmatpush1.msra.mxu0 0.0
    %173 = vmatprep.subr.mxu0 0.0
    %174 = vmatpush1.msra.mxu0 0.0
    %175 = vmatprep.subr.mxu0 0.0
    %176 = vmatpush1.msra.mxu0 0.0
    %177 = vmatprep.subr.mxu0 0.0
    %178 = vmatpush1.msra.mxu0 0.0
    %179 = vmatprep.subr.mxu0 0.0
    %180 = vmatpush1.msra.mxu0 0.0
    %181 = vmatprep.subr.mxu0 0.0
    %182 = vmatpush1.msra.mxu0 0.0
    %183 = vmatprep.subr.mxu0 0.0
    %184 = vmatpush1.msra.mxu0 0.0
    %185 = vmatprep.subr.mxu0 0.0
    %186 = vmatpush1.msra.mxu0 0.0
    %187 = vmatprep.mubr.f32.mxu0 0.0
    %188 = vmatmul.mubr.f32.gmra.mrb[0].mxu0 %v121
    %v189 = vpop.f32.mrb[0].mxu0
    %v190 = vadd.f32 %v119, %v189
    %v191 = vpop.f32.mrb[0].mxu0
    %192 = vdwg.mxu0
    %vm193 = vcmp.ge.f32.partialorder %v190, 0.0
    %v194 = vmul.f32 %v190, 0.2
    %v195 = vsel %vm193, %v190, %v194
    %v196 = vlaneseq
    %v197 = vshrl.u32 %v196, 7
    %v198 = vsub.s32 0, %v197
    %v199 = vrot.slane %v30, %v198
    %v201 = vsel %vm39, %v195, 0
    %203 = vmatprep.subr.mxu0 0.0
    %204 = vmatpush1.msra.mxu0 %v26
    %205 = vmatprep.subr.mxu0 0.0
    %206 = vmatpush1.msra.mxu0 %v27
    %207 = vmatprep.subr.mxu0 0.0
    %208 = vmatpush1.msra.mxu0 %v28
    %209 = vmatprep.subr.mxu0 0.0
    %210 = vmatpush1.msra.mxu0 %v29
    %211 = vmatprep.subr.mxu0 0.0
    %212 = vmatpush1.msra.mxu0 0.0
    %213 = vmatprep.subr.mxu0 0.0
    %214 = vmatpush1.msra.mxu0 0.0
    %215 = vmatprep.subr.mxu0 0.0
    %216 = vmatpush1.msra.mxu0 0.0
    %217 = vmatprep.subr.mxu0 0.0
    %218 = vmatpush1.msra.mxu0 0.0
    %219 = vmatprep.subr.mxu0 0.0
    %220 = vmatpush1.msra.mxu0 0.0
    %221 = vmatprep.subr.mxu0 0.0
    %222 = vmatpush1.msra.mxu0 0.0
    %223 = vmatprep.subr.mxu0 0.0
    %224 = vmatpush1.msra.mxu0 0.0
    %225 = vmatprep.subr.mxu0 0.0
    %226 = vmatpush1.msra.mxu0 0.0
    %227 = vmatprep.subr.mxu0 0.0
    %228 = vmatpush1.msra.mxu0 0.0
    %229 = vmatprep.subr.mxu0 0.0
    %230 = vmatpush1.msra.mxu0 0.0
    %231 = vmatprep.subr.mxu0 0.0
    %232 = vmatpush1.msra.mxu0 0.0
    %233 = vmatprep.subr.mxu0 0.0
    %234 = vmatpush1.msra.mxu0 0.0
    %235 = vmatprep.subr.mxu0 0.0
    %236 = vmatpush1.msra.mxu0 0.0
    %237 = vmatprep.subr.mxu0 0.0
    %238 = vmatpush1.msra.mxu0 0.0
    %239 = vmatprep.subr.mxu0 0.0
    %240 = vmatpush1.msra.mxu0 0.0
    %241 = vmatprep.subr.mxu0 0.0
    %242 = vmatpush1.msra.mxu0 0.0
    %243 = vmatprep.subr.mxu0 0.0
    %244 = vmatpush1.msra.mxu0 0.0
    %245 = vmatprep.subr.mxu0 0.0
    %246 = vmatpush1.msra.mxu0 0.0
    %247 = vmatprep.subr.mxu0 0.0
    %248 = vmatpush1.msra.mxu0 0.0
    %249 = vmatprep.subr.mxu0 0.0
    %250 = vmatpush1.msra.mxu0 0.0
    %251 = vmatprep.subr.mxu0 0.0
    %252 = vmatpush1.msra.mxu0 0.0
    %253 = vmatprep.subr.mxu0 0.0
    %254 = vmatpush1.msra.mxu0 0.0
    %255 = vmatprep.subr.mxu0 0.0
    %256 = vmatpush1.msra.mxu0 0.0
    %257 = vmatprep.subr.mxu0 0.0
    %258 = vmatpush1.msra.mxu0 0.0
    %259 = vmatprep.subr.mxu0 0.0
    %260 = vmatpush1.msra.mxu0 0.0
    %261 = vmatprep.subr.mxu0 0.0
    %262 = vmatpush1.msra.mxu0 0.0
    %263 = vmatprep.subr.mxu0 0.0
    %264 = vmatpush1.msra.mxu0 0.0
    %265 = vmatprep.subr.mxu0 0.0
    %266 = vmatpush1.msra.mxu0 0.0
    %267 = vmatprep.mubr.f32.mxu0 0.0
    %268 = vmatmul.mubr.f32.gmra.mrb[0].mxu0 %v201
    %v269 = vpop.f32.mrb[0].mxu0
    %v270 = vadd.f32 %v199, %v269
    %v271 = vpop.f32.mrb[0].mxu0
    %272 = vdwg.mxu0
    %vm273 = vcmask 254976
    %274 = vst.msk [vmem:[#allocation2] sm:$0x3] %vm273, %v270
    %vm275 = vcmp.ge.s32.totalorder %v32, 12
    %vm276 = vcmp.lt.s32.totalorder %v32, 16
    %vm277 = vmand %vm275, %vm276
    %v278 = vsel %vm277, %v270, -inf
    %v279 = vsel %vm273, %v278, -inf
    %280 = vmax.xlane.f32.xlu0 %v279
    %v281 = vpop.xlane.xlu0 %280
    %v282 = vsub.f32 %v270, %v281
    %v283 = vmul.f32 %v282, 1.442695
    %v284 = vpow.pop %v283
    %v285 = vsel %vm277, %v284, 0.0
    %v286 = vsel %vm273, %v285, 0.0
    %287 = vadd.xlane.f32.xlu0 %v286
    %v288 = vpop.xlane.xlu0 %287
    %v289 = vrcp.pop %v288
    %v290 = vmul.f32 %v285, %v289
    %v291 = vsel %vm277, %v290, %v270
    %v292 = vsel %vm276, %v15, 0.0
    %v293 = vsub.f32 %v291, %v292
    %vm294 = vcmp.lt.s32.totalorder %v32, 12
    %v295 = vsel %vm294, 0.0001, 1.0
    %v296 = vmul.f32 %v293, %v293
    %v297 = vmul.f32 %v296, %v295
    %v298 = vsel %vm273, %v297, 0.0
    %299 = vadd.xlane.f32.xlu0 %v298
    %v300 = vpop.xlane.xlu0 %299
    %v301 = vrot.slane %v300, 4
    %v302 = vadd.f32 %v300, %v301
    %v303 = vrot.slane %v302, 2
    %v304 = vadd.f32 %v302, %v303
    %v305 = vrot.slane %v304, 1
    %v306 = vadd.f32 %v304, %v305
    %s307 = vtos %v306
    %v308 = vrcp.pop 2.0
    %s309 = vtos %v308
    %s310 = smul.f32 %s307, %s309
    %vm311 = vcmp.eq.s32.totalorder %v34, 0
    %vm312 = vcmp.eq.s32.totalorder %v32, 24
    %vm313 = vmand %vm311, %vm312
    %v314 = vsel %vm313, %v15, 0.0
    %v315 = vsel %vm273, %v314, 0.0
    %316 = vadd.xlane.f32.xlu0 %v315
    %v317 = vpop.xlane.xlu0 %316
    %v318 = vrot.slane %v317, 4
    %v319 = vadd.f32 %v317, %v318
    %v320 = vrot.slane %v319, 2
    %v321 = vadd.f32 %v319, %v320
    %v322 = vrot.slane %v321, 1
    %v323 = vadd.f32 %v321, %v322
    %s324 = vtos %v323
    %s325 = scalar_lea.smem [#allocation5], 0
    %326 = sst [smem:[%s325]] %s310
    %s327 = smul.f32 %s310, %s324
    %s328 = scalar_lea.smem [#allocation5], 1
    %329 = sst [smem:[%s328]] %s327
    // Predicated region
    $region10: #{tpu_custom_call.1} parent=1 // pred_check
      _
    $region11: #{tpu_custom_call.1} parent=1 // pred_check_branch
      %331 = sbr.rel (0) target = $region13
    $region12: #{tpu_custom_call.1} parent=1 // pred_region
      %s333 = ssub.s32 32, 32
      %334 = vsyncadd [#allocation3], %s333
      %s336 = sshll.u32 [#allocation2], 4
      %s337 = int_to_ptr.vmem [resolvable:$true] %s336
      %339 = dma.vmem_to_hbm [thread:$0]  %s337, 32, %s2, [#allocation3]
    $region13: #{tpu_custom_call.1} parent=1 // pred_fallthru
      _
    // Predicated region
    $region14: #{tpu_custom_call.1} parent=1 // pred_check
      _
    $region15: #{tpu_custom_call.1} parent=1 // pred_check_branch
      %341 = sbr.rel (0) target = $region17
    $region16: #{tpu_custom_call.1} parent=1 // pred_region
      %s343 = ssub.s32 16, 16
      %344 = vsyncadd [#allocation4], %s343
      %347 = dma.smem_to_hbm [#allocation5], 16, %s3, [#allocation4]
    $region17: #{tpu_custom_call.1} parent=1 // pred_fallthru
      _
    // Predicated region
    $region18: #{tpu_custom_call.1} parent=1 // pred_check
      _
    $region19: #{tpu_custom_call.1} parent=1 // pred_check_branch
      %349 = sbr.rel (0) target = $region21
    $region20: #{tpu_custom_call.1} parent=1 // pred_region
      %350 = dma.done [#allocation3], 32
    $region21: #{tpu_custom_call.1} parent=1 // pred_fallthru
      _
    // Predicated region
    $region22: #{tpu_custom_call.1} parent=1 // pred_check
      _
    $region23: #{tpu_custom_call.1} parent=1 // pred_check_branch
      %352 = sbr.rel (0) target = $region25
    $region24: #{tpu_custom_call.1} parent=1 // pred_region
      %353 = dma.done [#allocation4], 16
    $region25: #{tpu_custom_call.1} parent=1 // pred_fallthru
      _
    %354 = sfence
    %355 = vsyncpa [#allocation3], 1
    %356 = vsyncpa [#allocation4], 1

</llo_original>
